<compile_context>
chip_gen: v5e
topology: v5e:2x2
jax: 0.10.0
libtpu: 0.0.40
codegen_flags: <defaults>
</compile_context>

<pallas_src>
import functools

import jax
import jax.numpy as jnp
import numpy as np
from jax.experimental import pallas as pl
from jax.experimental.pallas import tpu as pltpu

EPS = 1e-5


def _round_up(v, m):
    return (v + m - 1) // m * m


def _make_kernel(K, pad, N, inv_n, mxu_dtype):
    """Build the kernel body with static sizes baked in (closure over Python ints)."""
    f32 = jnp.float32

    def kernel(xw_ref, maskw_ref, maskc_ref,
               w1_ref, b1_ref, g1_ref, be1_ref,
               w2_ref, b2_ref, g2_ref, be2_ref,
               wr_ref, br_ref, gr_ref, ber_ref,
               o_ref):
        # xw      : (Ipad, N + 4*pad)  packed, over-padded input (MXU dtype)
        # maskw   : (1, N + 2*pad)     1.0 at data columns of the conv1-output frame
        # maskc   : (N, 1)             1.0 at data columns of the output frame (column form)
        # w1      : (K, Opad, Ipad)    per-tap conv1 weights      (MXU dtype)
        # w2      : (K, Opad, Opad)    per-tap conv2 weights      (MXU dtype)
        # wr      : (Opad, Ipad)       1x1 residual conv weight   (MXU dtype)
        # b*/g*/be*: (Opad, 1)         f32 biases / BN gammas / BN betas
        # o_ref   : (Opad, N)          lane-dense f32 output
        Nw = N + 2 * pad
        xw = xw_ref[...]
        maskw_row = maskw_ref[...]
        mask_col = maskc_ref[...]

        def bn_fold(hc, g, be):
            # Training-mode BatchNorm folded to a per-channel scale/shift.
            # Two-pass (mean, then centered sum of squares) avoids E[x^2]-E[x]^2
            # cancellation; both lane reductions are masked MXU mat-vecs, so the
            # VPU/XLU slots stay free and pad/gap columns never need pre-zeroing.
            m = jnp.dot(hc, mask_col, preferred_element_type=f32) * inv_n        # (Opad,1)
            dc = hc - m
            v = jnp.dot(dc * dc, mask_col, preferred_element_type=f32) * inv_n   # biased var
            scale = g * jax.lax.rsqrt(jnp.maximum(v, 0.0) + EPS)
            shift = be - m * scale
            return scale, shift

        # ---- conv1: K accumulated per-tap MXU matmuls (no tap-stacked RHS copy) ----
        h1 = jnp.dot(w1_ref[0], xw[:, 0:Nw], preferred_element_type=f32)
        for k in range(1, K):
            h1 = h1 + jnp.dot(w1_ref[k], xw[:, k:k + Nw], preferred_element_type=f32)
        h1 = h1 + b1_ref[...]                                                    # (Opad, Nw)

        # ---- residual 1x1 conv on the output data frame ----
        hr = jnp.dot(wr_ref[...], xw[:, 2 * pad:2 * pad + N],
                     preferred_element_type=f32) + br_ref[...]                   # (Opad, N)

        # ---- bn1 + relu; re-mask so pad/gap columns feed zeros into conv2 ----
        sc1, sh1 = bn_fold(h1[:, pad:pad + N], g1_ref[...], be1_ref[...])
        a1 = jnp.maximum(h1 * sc1 + sh1, 0.0) * maskw_row                        # (Opad, Nw)
        a1m = a1.astype(mxu_dtype)

        # ---- conv2: K accumulated per-tap MXU matmuls ----
        h2 = jnp.dot(w2_ref[0], a1m[:, 0:N], preferred_element_type=f32)
        for k in range(1, K):
            h2 = h2 + jnp.dot(w2_ref[k], a1m[:, k:k + N], preferred_element_type=f32)
        h2 = h2 + b2_ref[...]                                                    # (Opad, N)

        # ---- bn2 + res_norm + add + relu -> lane-dense store (pad cols sliced outside) ----
        sc2, sh2 = bn_fold(h2, g2_ref[...], be2_ref[...])
        scr, shr = bn_fold(hr, gr_ref[...], ber_ref[...])
        o_ref[...] = jnp.maximum((h2 * sc2 + sh2) + (hr * scr + shr), 0.0)

    return kernel


@functools.partial(jax.jit, static_argnames=("mxu_dtype",))
def res_block_forward(x, params, *, mxu_dtype=jnp.bfloat16):
    """x: (B, C_in, L) float32, layout NCL.  Returns (B, C_out, L) float32."""
    B, I, L = x.shape
    O, _, K = params["w1"].shape
    pad = (K - 1) // 2
    f32 = jnp.float32

    # ---- layout constants: channels -> sublanes (x8), packed batches -> lanes (x128) ----
    Ipad = _round_up(I, 8)
    Opad = _round_up(O, 8)
    S = L + pad                       # per-batch lane stride: only `pad` zeros between batches
    N = _round_up(B * S, 128)         # lane-dense flat width of every activation
    Nw = N + 2 * pad
    inv_n = 1.0 / float(B * L)

    # channel-major packed layout; over-pad lanes by 2*pad per side so every conv tap is
    # a plain static lane slice (no rolls, no per-batch edge handling).
    xp = jnp.pad(x.astype(f32), ((0, 0), (0, Ipad - I), (0, pad)))               # (B, Ipad, S)
    x_flat = jnp.transpose(xp, (1, 0, 2)).reshape(Ipad, B * S)
    x_wide = jnp.pad(x_flat, ((0, 0), (2 * pad, (N - B * S) + 2 * pad))).astype(mxu_dtype)

    # valid-column masks (row form for re-masking a1, column form for stat mat-vecs)
    cols = jnp.arange(N, dtype=jnp.int32)
    mask = jnp.logical_and(cols % S < L, cols < B * S).astype(f32)               # (N,)
    mask_col = mask.reshape(N, 1)
    maskw_row = jnp.pad(mask, (pad, pad)).reshape(1, Nw)

    def per_tap(w, cin, cin_pad):     # (O, cin, K) -> (K, Opad, cin_pad)
        wp = jnp.pad(w.astype(f32), ((0, Opad - O), (0, cin_pad - cin), (0, 0)))
        return jnp.transpose(wp, (2, 0, 1)).astype(mxu_dtype)

    w1 = per_tap(params["w1"], I, Ipad)
    w2 = per_tap(params["w2"], O, Opad)
    wr = jnp.pad(params["wr"][:, :, 0].astype(f32),
                 ((0, Opad - O), (0, Ipad - I))).astype(mxu_dtype)

    def col(v):
        return jnp.pad(v.astype(f32), (0, Opad - O)).reshape(Opad, 1)

    args = (x_wide, maskw_row, mask_col,
            w1, col(params["b1"]), col(params["g1"]), col(params["be1"]),
            w2, col(params["b2"]), col(params["g2"]), col(params["be2"]),
            wr, col(params["br"]), col(params["gr"]), col(params["ber"]))

    # VMEM sizing: real footprint (inputs + output + live intermediates) with a
    # per-generation cap from the hardware (fallback keeps v7x's 64 MiB safe).
    mxu_bytes = jnp.dtype(mxu_dtype).itemsize
    est = (mxu_bytes * (Ipad * (N + 4 * pad) + K * Opad * (Ipad + Opad)
                        + Opad * Ipad + Opad * Nw)
           + 4 * (Opad * (2 * Nw + 5 * N) + Nw + N + 12 * Opad))
    try:
        cap = int(pltpu.get_tpu_info().vmem_capacity_bytes)
    except Exception:
        cap = 64 * 1024 * 1024
    vmem_limit = int(min(max(2 * est, 32 * 1024 * 1024), (cap * 7) // 8))

    kernel = _make_kernel(K, pad, N, inv_n, mxu_dtype)
    out_flat = pl.pallas_call(
        kernel,
        out_shape=jax.ShapeDtypeStruct((Opad, N), f32),
        in_specs=[pl.BlockSpec(memory_space=pltpu.MemorySpace.VMEM)] * len(args),
        out_specs=pl.BlockSpec(memory_space=pltpu.MemorySpace.VMEM),
        compiler_params=pltpu.CompilerParams(vmem_limit_bytes=vmem_limit),
    )(*args)

    # lane-packed (Opad, N) -> (B, O, L)
    out = out_flat[:O, :B * S].reshape(O, B, S)[:, :, :L]
    return jnp.transpose(out, (1, 0, 2))


# ---------------- pure-JAX reference (for correctness check) ----------------
def _ref_resblock(x, p):
    prec = jax.lax.Precision.HIGHEST

    def conv1d(h, w, b, pad):
        y = jax.lax.conv_general_dilated(
            h, w, window_strides=(1,), padding=[(pad, pad)],
            dimension_numbers=("NCH", "OIH", "NCH"), precision=prec)
        return y + b[None, :, None]

    def bn(h, g, be):
        m = jnp.mean(h, axis=(0, 2), keepdims=True)
        v = jnp.mean((h - m) ** 2, axis=(0, 2), keepdims=True)
        return g[None, :, None] * (h - m) / jnp.sqrt(v + EPS) + be[None, :, None]

    pad = (p["w1"].shape[2] - 1) // 2
    h = jax.nn.relu(bn(conv1d(x, p["w1"], p["b1"], pad), p["g1"], p["be1"]))
    h = bn(conv1d(h, p["w2"], p["b2"], pad), p["g2"], p["be2"])
    r = bn(conv1d(x, p["wr"], p["br"], 0), p["gr"], p["ber"])
    return jax.nn.relu(h + r)


if __name__ == "__main__":
    B, C_in, C_out, L, K = 2, 4, 8, 16, 3   # num_ins != num_outs -> residual conv path

    key = jax.random.PRNGKey(0)
    ks = jax.random.split(key, 16)
    normal = lambda k, s, scale=1.0: scale * jax.random.normal(k, s, dtype=jnp.float32)

    x = normal(ks[0], (B, C_in, L))
    params = {
        "w1": normal(ks[1], (C_out, C_in, K), 0.3),
        "b1": normal(ks[2], (C_out,), 0.1),
        "g1": 1.0 + normal(ks[3], (C_out,), 0.1),
        "be1": normal(ks[4], (C_out,), 0.1),
        "w2": normal(ks[5], (C_out, C_out, K), 0.3),
        "b2": normal(ks[6], (C_out,), 0.1),
        "g2": 1.0 + normal(ks[7], (C_out,), 0.1),
        "be2": normal(ks[8], (C_out,), 0.1),
        "wr": normal(ks[9], (C_out, C_in, 1), 0.3),
        "br": normal(ks[10], (C_out,), 0.1),
        "gr": 1.0 + normal(ks[11], (C_out,), 0.1),
        "ber": normal(ks[12], (C_out,), 0.1),
    }

    out = jax.block_until_ready(res_block_forward(x, params))   # bf16 MXU operands, f32 math
    ref = jax.block_until_ready(_ref_resblock(x, params))

    # bf16-operand parity tolerance (f32 accumulation / f32 BN-ReLU math inside the kernel)
    np.testing.assert_allclose(np.asarray(out), np.asarray(ref), rtol=5e-2, atol=5e-2)
    print("KERNEL_OK")
</pallas_src>

<mosaic_0001>
module attributes {stable_mosaic.version = 11 : i64} {
  func.func @kernel(%arg0: memref<8x132xbf16, #tpu.memory_space<vmem>>, %arg1: memref<1x130xf32, #tpu.memory_space<vmem>>, %arg2: memref<128x1xf32, #tpu.memory_space<vmem>>, %arg3: memref<3x8x8xbf16, #tpu.memory_space<vmem>>, %arg4: memref<8x1xf32, #tpu.memory_space<vmem>>, %arg5: memref<8x1xf32, #tpu.memory_space<vmem>>, %arg6: memref<8x1xf32, #tpu.memory_space<vmem>>, %arg7: memref<3x8x8xbf16, #tpu.memory_space<vmem>>, %arg8: memref<8x1xf32, #tpu.memory_space<vmem>>, %arg9: memref<8x1xf32, #tpu.memory_space<vmem>>, %arg10: memref<8x1xf32, #tpu.memory_space<vmem>>, %arg11: memref<8x8xbf16, #tpu.memory_space<vmem>>, %arg12: memref<8x1xf32, #tpu.memory_space<vmem>>, %arg13: memref<8x1xf32, #tpu.memory_space<vmem>>, %arg14: memref<8x1xf32, #tpu.memory_space<vmem>>, %arg15: memref<8x128xf32, #tpu.memory_space<vmem>>) attributes {dimension_semantics = [], scalar_prefetch = 0 : i64, scratch_operands = 0 : i64, tpu.core_type = #tpu.core_type<tc>} {
    %c0 = arith.constant 0 : index
    %c0_0 = arith.constant 0 : index
    %0 = vector.load %arg0[%c0, %c0_0] : memref<8x132xbf16, #tpu.memory_space<vmem>>, vector<8x132xbf16>
    %c0_1 = arith.constant 0 : index
    %c0_2 = arith.constant 0 : index
    %1 = vector.load %arg1[%c0_1, %c0_2] : memref<1x130xf32, #tpu.memory_space<vmem>>, vector<1x130xf32>
    %c0_3 = arith.constant 0 : index
    %c0_4 = arith.constant 0 : index
    %2 = vector.load %arg2[%c0_3, %c0_4] : memref<128x1xf32, #tpu.memory_space<vmem>>, vector<128x1xf32>
    %c0_5 = arith.constant 0 : index
    %c0_6 = arith.constant 0 : index
    %c0_7 = arith.constant 0 : index
    %3 = vector.load %arg3[%c0_5, %c0_6, %c0_7] : memref<3x8x8xbf16, #tpu.memory_space<vmem>>, vector<1x8x8xbf16>
    %4 = vector.shape_cast %3 : vector<1x8x8xbf16> to vector<8x8xbf16>
    %5 = vector.extract_strided_slice %0 {offsets = [0, 0], sizes = [8, 130], strides = [1, 1]} : vector<8x132xbf16> to vector<8x130xbf16>
    %cst = arith.constant dense<0.000000e+00> : vector<8x130xf32>
    %6 = tpu.matmul %4, %5, %cst {dimension_numbers = #tpu.dot_dimension_numbers<[1], [0], [0], [1], [0, 0, 1, 1], [], []>} : vector<8x8xbf16>, vector<8x130xbf16>, vector<8x130xf32> -> vector<8x130xf32>
    %c1 = arith.constant 1 : index
    %c0_8 = arith.constant 0 : index
    %c0_9 = arith.constant 0 : index
    %7 = vector.load %arg3[%c1, %c0_8, %c0_9] : memref<3x8x8xbf16, #tpu.memory_space<vmem>>, vector<1x8x8xbf16>
    %8 = vector.shape_cast %7 : vector<1x8x8xbf16> to vector<8x8xbf16>
    %9 = vector.extract_strided_slice %0 {offsets = [0, 1], sizes = [8, 130], strides = [1, 1]} : vector<8x132xbf16> to vector<8x130xbf16>
    %cst_10 = arith.constant dense<0.000000e+00> : vector<8x130xf32>
    %10 = tpu.matmul %8, %9, %cst_10 {dimension_numbers = #tpu.dot_dimension_numbers<[1], [0], [0], [1], [0, 0, 1, 1], [], []>} : vector<8x8xbf16>, vector<8x130xbf16>, vector<8x130xf32> -> vector<8x130xf32>
    %11 = arith.addf %6, %10 : vector<8x130xf32>
    %c2 = arith.constant 2 : index
    %c0_11 = arith.constant 0 : index
    %c0_12 = arith.constant 0 : index
    %12 = vector.load %arg3[%c2, %c0_11, %c0_12] : memref<3x8x8xbf16, #tpu.memory_space<vmem>>, vector<1x8x8xbf16>
    %13 = vector.shape_cast %12 : vector<1x8x8xbf16> to vector<8x8xbf16>
    %14 = vector.extract_strided_slice %0 {offsets = [0, 2], sizes = [8, 130], strides = [1, 1]} : vector<8x132xbf16> to vector<8x130xbf16>
    %cst_13 = arith.constant dense<0.000000e+00> : vector<8x130xf32>
    %15 = tpu.matmul %13, %14, %cst_13 {dimension_numbers = #tpu.dot_dimension_numbers<[1], [0], [0], [1], [0, 0, 1, 1], [], []>} : vector<8x8xbf16>, vector<8x130xbf16>, vector<8x130xf32> -> vector<8x130xf32>
    %16 = arith.addf %11, %15 : vector<8x130xf32>
    %c0_14 = arith.constant 0 : index
    %c0_15 = arith.constant 0 : index
    %17 = vector.load %arg4[%c0_14, %c0_15] : memref<8x1xf32, #tpu.memory_space<vmem>>, vector<8x1xf32>
    %18 = vector.broadcast %17 : vector<8x1xf32> to vector<8x130xf32>
    %19 = arith.addf %16, %18 : vector<8x130xf32>
    %c0_16 = arith.constant 0 : index
    %c0_17 = arith.constant 0 : index
    %20 = vector.load %arg11[%c0_16, %c0_17] : memref<8x8xbf16, #tpu.memory_space<vmem>>, vector<8x8xbf16>
    %21 = vector.extract_strided_slice %0 {offsets = [0, 2], sizes = [8, 128], strides = [1, 1]} : vector<8x132xbf16> to vector<8x128xbf16>
    %cst_18 = arith.constant dense<0.000000e+00> : vector<8x128xf32>
    %22 = tpu.matmul %20, %21, %cst_18 {dimension_numbers = #tpu.dot_dimension_numbers<[1], [0], [0], [1], [0, 0, 1, 1], [], []>} : vector<8x8xbf16>, vector<8x128xbf16>, vector<8x128xf32> -> vector<8x128xf32>
    %c0_19 = arith.constant 0 : index
    %c0_20 = arith.constant 0 : index
    %23 = vector.load %arg12[%c0_19, %c0_20] : memref<8x1xf32, #tpu.memory_space<vmem>>, vector<8x1xf32>
    %24 = vector.broadcast %23 : vector<8x1xf32> to vector<8x128xf32>
    %25 = arith.addf %22, %24 : vector<8x128xf32>
    %26 = vector.extract_strided_slice %19 {offsets = [0, 1], sizes = [8, 128], strides = [1, 1]} : vector<8x130xf32> to vector<8x128xf32>
    %c0_21 = arith.constant 0 : index
    %c0_22 = arith.constant 0 : index
    %27 = vector.load %arg5[%c0_21, %c0_22] : memref<8x1xf32, #tpu.memory_space<vmem>>, vector<8x1xf32>
    %c0_23 = arith.constant 0 : index
    %c0_24 = arith.constant 0 : index
    %28 = vector.load %arg6[%c0_23, %c0_24] : memref<8x1xf32, #tpu.memory_space<vmem>>, vector<8x1xf32>
    %cst_25 = arith.constant dense<0.000000e+00> : vector<8x1xf32>
    %29 = tpu.matmul %26, %2, %cst_25 {dimension_numbers = #tpu.dot_dimension_numbers<[1], [0], [0], [1], [0, 0, 1, 1], [], []>} : vector<8x128xf32>, vector<128x1xf32>, vector<8x1xf32> -> vector<8x1xf32>
    %cst_26 = arith.constant 3.125000e-02 : f32
    %30 = vector.broadcast %cst_26 : f32 to vector<8x1xf32>
    %31 = arith.mulf %29, %30 : vector<8x1xf32>
    %32 = vector.broadcast %31 : vector<8x1xf32> to vector<8x128xf32>
    %33 = arith.subf %26, %32 : vector<8x128xf32>
    %34 = arith.mulf %33, %33 : vector<8x128xf32>
    %cst_27 = arith.constant dense<0.000000e+00> : vector<8x1xf32>
    %35 = tpu.matmul %34, %2, %cst_27 {dimension_numbers = #tpu.dot_dimension_numbers<[1], [0], [0], [1], [0, 0, 1, 1], [], []>} : vector<8x128xf32>, vector<128x1xf32>, vector<8x1xf32> -> vector<8x1xf32>
    %cst_28 = arith.constant 3.125000e-02 : f32
    %36 = vector.broadcast %cst_28 : f32 to vector<8x1xf32>
    %37 = arith.mulf %35, %36 : vector<8x1xf32>
    %cst_29 = arith.constant 0.000000e+00 : f32
    %38 = vector.broadcast %cst_29 : f32 to vector<8x1xf32>
    %39 = arith.maximumf %37, %38 : vector<8x1xf32>
    %cst_30 = arith.constant 9.99999974E-6 : f32
    %40 = vector.broadcast %cst_30 : f32 to vector<8x1xf32>
    %41 = arith.addf %39, %40 : vector<8x1xf32>
    %42 = math.rsqrt %41 : vector<8x1xf32>
    %43 = arith.mulf %27, %42 : vector<8x1xf32>
    %44 = arith.mulf %31, %43 : vector<8x1xf32>
    %45 = arith.subf %28, %44 : vector<8x1xf32>
    %46 = vector.broadcast %43 : vector<8x1xf32> to vector<8x130xf32>
    %47 = arith.mulf %19, %46 : vector<8x130xf32>
    %48 = vector.broadcast %45 : vector<8x1xf32> to vector<8x130xf32>
    %49 = arith.addf %47, %48 : vector<8x130xf32>
    %cst_31 = arith.constant 0.000000e+00 : f32
    %50 = vector.broadcast %cst_31 : f32 to vector<8x130xf32>
    %51 = arith.maximumf %49, %50 : vector<8x130xf32>
    %52 = vector.broadcast %1 : vector<1x130xf32> to vector<8x130xf32>
    %53 = arith.mulf %51, %52 : vector<8x130xf32>
    %54 = arith.truncf %53 : vector<8x130xf32> to vector<8x130xbf16>
    %c0_32 = arith.constant 0 : index
    %c0_33 = arith.constant 0 : index
    %c0_34 = arith.constant 0 : index
    %55 = vector.load %arg7[%c0_32, %c0_33, %c0_34] : memref<3x8x8xbf16, #tpu.memory_space<vmem>>, vector<1x8x8xbf16>
    %56 = vector.shape_cast %55 : vector<1x8x8xbf16> to vector<8x8xbf16>
    %57 = vector.extract_strided_slice %54 {offsets = [0, 0], sizes = [8, 128], strides = [1, 1]} : vector<8x130xbf16> to vector<8x128xbf16>
    %cst_35 = arith.constant dense<0.000000e+00> : vector<8x128xf32>
    %58 = tpu.matmul %56, %57, %cst_35 {dimension_numbers = #tpu.dot_dimension_numbers<[1], [0], [0], [1], [0, 0, 1, 1], [], []>} : vector<8x8xbf16>, vector<8x128xbf16>, vector<8x128xf32> -> vector<8x128xf32>
    %c1_36 = arith.constant 1 : index
    %c0_37 = arith.constant 0 : index
    %c0_38 = arith.constant 0 : index
    %59 = vector.load %arg7[%c1_36, %c0_37, %c0_38] : memref<3x8x8xbf16, #tpu.memory_space<vmem>>, vector<1x8x8xbf16>
    %60 = vector.shape_cast %59 : vector<1x8x8xbf16> to vector<8x8xbf16>
    %61 = vector.extract_strided_slice %54 {offsets = [0, 1], sizes = [8, 128], strides = [1, 1]} : vector<8x130xbf16> to vector<8x128xbf16>
    %cst_39 = arith.constant dense<0.000000e+00> : vector<8x128xf32>
    %62 = tpu.matmul %60, %61, %cst_39 {dimension_numbers = #tpu.dot_dimension_numbers<[1], [0], [0], [1], [0, 0, 1, 1], [], []>} : vector<8x8xbf16>, vector<8x128xbf16>, vector<8x128xf32> -> vector<8x128xf32>
    %63 = arith.addf %58, %62 : vector<8x128xf32>
    %c2_40 = arith.constant 2 : index
    %c0_41 = arith.constant 0 : index
    %c0_42 = arith.constant 0 : index
    %64 = vector.load %arg7[%c2_40, %c0_41, %c0_42] : memref<3x8x8xbf16, #tpu.memory_space<vmem>>, vector<1x8x8xbf16>
    %65 = vector.shape_cast %64 : vector<1x8x8xbf16> to vector<8x8xbf16>
    %66 = vector.extract_strided_slice %54 {offsets = [0, 2], sizes = [8, 128], strides = [1, 1]} : vector<8x130xbf16> to vector<8x128xbf16>
    %cst_43 = arith.constant dense<0.000000e+00> : vector<8x128xf32>
    %67 = tpu.matmul %65, %66, %cst_43 {dimension_numbers = #tpu.dot_dimension_numbers<[1], [0], [0], [1], [0, 0, 1, 1], [], []>} : vector<8x8xbf16>, vector<8x128xbf16>, vector<8x128xf32> -> vector<8x128xf32>
    %68 = arith.addf %63, %67 : vector<8x128xf32>
    %c0_44 = arith.constant 0 : index
    %c0_45 = arith.constant 0 : index
    %69 = vector.load %arg8[%c0_44, %c0_45] : memref<8x1xf32, #tpu.memory_space<vmem>>, vector<8x1xf32>
    %70 = vector.broadcast %69 : vector<8x1xf32> to vector<8x128xf32>
    %71 = arith.addf %68, %70 : vector<8x128xf32>
    %c0_46 = arith.constant 0 : index
    %c0_47 = arith.constant 0 : index
    %72 = vector.load %arg9[%c0_46, %c0_47] : memref<8x1xf32, #tpu.memory_space<vmem>>, vector<8x1xf32>
    %c0_48 = arith.constant 0 : index
    %c0_49 = arith.constant 0 : index
    %73 = vector.load %arg10[%c0_48, %c0_49] : memref<8x1xf32, #tpu.memory_space<vmem>>, vector<8x1xf32>
    %cst_50 = arith.constant dense<0.000000e+00> : vector<8x1xf32>
    %74 = tpu.matmul %71, %2, %cst_50 {dimension_numbers = #tpu.dot_dimension_numbers<[1], [0], [0], [1], [0, 0, 1, 1], [], []>} : vector<8x128xf32>, vector<128x1xf32>, vector<8x1xf32> -> vector<8x1xf32>
    %cst_51 = arith.constant 3.125000e-02 : f32
    %75 = vector.broadcast %cst_51 : f32 to vector<8x1xf32>
    %76 = arith.mulf %74, %75 : vector<8x1xf32>
    %77 = vector.broadcast %76 : vector<8x1xf32> to vector<8x128xf32>
    %78 = arith.subf %71, %77 : vector<8x128xf32>
    %79 = arith.mulf %78, %78 : vector<8x128xf32>
    %cst_52 = arith.constant dense<0.000000e+00> : vector<8x1xf32>
    %80 = tpu.matmul %79, %2, %cst_52 {dimension_numbers = #tpu.dot_dimension_numbers<[1], [0], [0], [1], [0, 0, 1, 1], [], []>} : vector<8x128xf32>, vector<128x1xf32>, vector<8x1xf32> -> vector<8x1xf32>
    %cst_53 = arith.constant 3.125000e-02 : f32
    %81 = vector.broadcast %cst_53 : f32 to vector<8x1xf32>
    %82 = arith.mulf %80, %81 : vector<8x1xf32>
    %cst_54 = arith.constant 0.000000e+00 : f32
    %83 = vector.broadcast %cst_54 : f32 to vector<8x1xf32>
    %84 = arith.maximumf %82, %83 : vector<8x1xf32>
    %cst_55 = arith.constant 9.99999974E-6 : f32
    %85 = vector.broadcast %cst_55 : f32 to vector<8x1xf32>
    %86 = arith.addf %84, %85 : vector<8x1xf32>
    %87 = math.rsqrt %86 : vector<8x1xf32>
    %88 = arith.mulf %72, %87 : vector<8x1xf32>
    %89 = arith.mulf %76, %88 : vector<8x1xf32>
    %90 = arith.subf %73, %89 : vector<8x1xf32>
    %c0_56 = arith.constant 0 : index
    %c0_57 = arith.constant 0 : index
    %91 = vector.load %arg13[%c0_56, %c0_57] : memref<8x1xf32, #tpu.memory_space<vmem>>, vector<8x1xf32>
    %c0_58 = arith.constant 0 : index
    %c0_59 = arith.constant 0 : index
    %92 = vector.load %arg14[%c0_58, %c0_59] : memref<8x1xf32, #tpu.memory_space<vmem>>, vector<8x1xf32>
    %cst_60 = arith.constant dense<0.000000e+00> : vector<8x1xf32>
    %93 = tpu.matmul %25, %2, %cst_60 {dimension_numbers = #tpu.dot_dimension_numbers<[1], [0], [0], [1], [0, 0, 1, 1], [], []>} : vector<8x128xf32>, vector<128x1xf32>, vector<8x1xf32> -> vector<8x1xf32>
    %cst_61 = arith.constant 3.125000e-02 : f32
    %94 = vector.broadcast %cst_61 : f32 to vector<8x1xf32>
    %95 = arith.mulf %93, %94 : vector<8x1xf32>
    %96 = vector.broadcast %95 : vector<8x1xf32> to vector<8x128xf32>
    %97 = arith.subf %25, %96 : vector<8x128xf32>
    %98 = arith.mulf %97, %97 : vector<8x128xf32>
    %cst_62 = arith.constant dense<0.000000e+00> : vector<8x1xf32>
    %99 = tpu.matmul %98, %2, %cst_62 {dimension_numbers = #tpu.dot_dimension_numbers<[1], [0], [0], [1], [0, 0, 1, 1], [], []>} : vector<8x128xf32>, vector<128x1xf32>, vector<8x1xf32> -> vector<8x1xf32>
    %cst_63 = arith.constant 3.125000e-02 : f32
    %100 = vector.broadcast %cst_63 : f32 to vector<8x1xf32>
    %101 = arith.mulf %99, %100 : vector<8x1xf32>
    %cst_64 = arith.constant 0.000000e+00 : f32
    %102 = vector.broadcast %cst_64 : f32 to vector<8x1xf32>
    %103 = arith.maximumf %101, %102 : vector<8x1xf32>
    %cst_65 = arith.constant 9.99999974E-6 : f32
    %104 = vector.broadcast %cst_65 : f32 to vector<8x1xf32>
    %105 = arith.addf %103, %104 : vector<8x1xf32>
    %106 = math.rsqrt %105 : vector<8x1xf32>
    %107 = arith.mulf %91, %106 : vector<8x1xf32>
    %108 = arith.mulf %95, %107 : vector<8x1xf32>
    %109 = arith.subf %92, %108 : vector<8x1xf32>
    %110 = vector.broadcast %88 : vector<8x1xf32> to vector<8x128xf32>
    %111 = arith.mulf %71, %110 : vector<8x128xf32>
    %112 = vector.broadcast %90 : vector<8x1xf32> to vector<8x128xf32>
    %113 = arith.addf %111, %112 : vector<8x128xf32>
    %114 = vector.broadcast %107 : vector<8x1xf32> to vector<8x128xf32>
    %115 = arith.mulf %25, %114 : vector<8x128xf32>
    %116 = vector.broadcast %109 : vector<8x1xf32> to vector<8x128xf32>
    %117 = arith.addf %115, %116 : vector<8x128xf32>
    %118 = arith.addf %113, %117 : vector<8x128xf32>
    %cst_66 = arith.constant 0.000000e+00 : f32
    %119 = vector.broadcast %cst_66 : f32 to vector<8x128xf32>
    %120 = arith.maximumf %118, %119 : vector<8x128xf32>
    %c0_67 = arith.constant 0 : index
    %c0_68 = arith.constant 0 : index
    %121 = vector.load %arg15[%c0_67, %c0_68] : memref<8x128xf32, #tpu.memory_space<vmem>>, vector<8x128xf32>
    tpu.vector_store %arg15[%c0_67, %c0_68], %120 {strides = array<i32>} : memref<8x128xf32, #tpu.memory_space<vmem>>, vector<8x128xf32>,
    return
  }
}

</mosaic_0001>

<llo_original>
// kernel: res_block_forward.1
$region0: #{res_block_forward.1}
  #allocation0 [shape = 'u32[]', space=smem, size = 0x4, offset = 0x4, fixed_abs, tag = 'smem constant byte address 0x4 - core index']
  #allocation1 [shape = 'u32[72,128]{1,0:T(1,128)}', space=vmem, size = 0x9000, scoped, tag = 'internal scratch']
  %s0 = inlined_call_operand.vmem [shape: bf16[8,132], index: 0, kind: input, shape index: {}]
  %s1 = inlined_call_operand.vmem [shape: f32[1,130], index: 1, kind: input, shape index: {}]
  %s2 = inlined_call_operand.vmem [shape: f32[128,1], index: 2, kind: input, shape index: {}]
  %s3 = inlined_call_operand.vmem [shape: bf16[3,8,8], index: 3, kind: input, shape index: {}]
  %s4 = inlined_call_operand.vmem [shape: f32[8,1], index: 4, kind: input, shape index: {}]
  %s5 = inlined_call_operand.vmem [shape: f32[8,1], index: 5, kind: input, shape index: {}]
  %s6 = inlined_call_operand.vmem [shape: f32[8,1], index: 6, kind: input, shape index: {}]
  %s7 = inlined_call_operand.vmem [shape: bf16[3,8,8], index: 7, kind: input, shape index: {}]
  %s8 = inlined_call_operand.vmem [shape: f32[8,1], index: 8, kind: input, shape index: {}]
  %s9 = inlined_call_operand.vmem [shape: f32[8,1], index: 9, kind: input, shape index: {}]
  %s10 = inlined_call_operand.vmem [shape: f32[8,1], index: 10, kind: input, shape index: {}]
  %s11 = inlined_call_operand.vmem [shape: bf16[8,8], index: 11, kind: input, shape index: {}]
  %s12 = inlined_call_operand.vmem [shape: f32[8,1], index: 12, kind: input, shape index: {}]
  %s13 = inlined_call_operand.vmem [shape: f32[8,1], index: 13, kind: input, shape index: {}]
  %s14 = inlined_call_operand.vmem [shape: f32[8,1], index: 14, kind: input, shape index: {}]
  %s15 = inlined_call_operand.vmem [shape: f32[8,128], index: 15, kind: output, shape index: {}]
  %s16 = sld [smem:[#allocation0]]
  $region70: #{res_block_forward.1} parent=0
    _
  %s18 = ssub.s32 1, %s16
  %s19 = scalar_select 0, %s18, %s16
  // Predicated region
  $region2: #{res_block_forward.1} parent=0 // pred_check
    _
  $region3: #{res_block_forward.1} parent=0 // pred_check_branch
    %21 = sbr.rel (0) target = $region5
  $region4: #{res_block_forward.1} parent=0 // pred_region
    _
  $region5: #{res_block_forward.1} parent=0 // pred_fallthru
    _
  // Predicated region
  $region6: #{res_block_forward.1} parent=0 // pred_check
    _
  $region7: #{res_block_forward.1} parent=0 // pred_check_branch
    %23 = sbr.rel (0) target = $region9
  $region8: #{res_block_forward.1} parent=0 // pred_region
    _
  $region9: #{res_block_forward.1} parent=0 // pred_fallthru
    _
  // Predicated region
  $region10: #{res_block_forward.1} parent=0 // pred_check
    _
  $region11: #{res_block_forward.1} parent=0 // pred_check_branch
    %25 = sbr.rel (0) target = $region13
  $region12: #{res_block_forward.1} parent=0 // pred_region
    _
  $region13: #{res_block_forward.1} parent=0 // pred_fallthru
    _
  // Predicated region
  $region14: #{res_block_forward.1} parent=0 // pred_check
    _
  $region15: #{res_block_forward.1} parent=0 // pred_check_branch
    %27 = sbr.rel (0) target = $region17
  $region16: #{res_block_forward.1} parent=0 // pred_region
    _
  $region17: #{res_block_forward.1} parent=0 // pred_fallthru
    _
  // Predicated region
  $region18: #{res_block_forward.1} parent=0 // pred_check
    _
  $region19: #{res_block_forward.1} parent=0 // pred_check_branch
    %29 = sbr.rel (0) target = $region21
  $region20: #{res_block_forward.1} parent=0 // pred_region
    _
  $region21: #{res_block_forward.1} parent=0 // pred_fallthru
    _
  // Predicated region
  $region22: #{res_block_forward.1} parent=0 // pred_check
    _
  $region23: #{res_block_forward.1} parent=0 // pred_check_branch
    %31 = sbr.rel (0) target = $region25
  $region24: #{res_block_forward.1} parent=0 // pred_region
    _
  $region25: #{res_block_forward.1} parent=0 // pred_fallthru
    _
  // Predicated region
  $region26: #{res_block_forward.1} parent=0 // pred_check
    _
  $region27: #{res_block_forward.1} parent=0 // pred_check_branch
    %33 = sbr.rel (0) target = $region29
  $region28: #{res_block_forward.1} parent=0 // pred_region
    _
  $region29: #{res_block_forward.1} parent=0 // pred_fallthru
    _
  // Predicated region
  $region30: #{res_block_forward.1} parent=0 // pred_check
    _
  $region31: #{res_block_forward.1} parent=0 // pred_check_branch
    %35 = sbr.rel (0) target = $region33
  $region32: #{res_block_forward.1} parent=0 // pred_region
    _
  $region33: #{res_block_forward.1} parent=0 // pred_fallthru
    _
  // Predicated region
  $region34: #{res_block_forward.1} parent=0 // pred_check
    _
  $region35: #{res_block_forward.1} parent=0 // pred_check_branch
    %37 = sbr.rel (0) target = $region37
  $region36: #{res_block_forward.1} parent=0 // pred_region
    _
  $region37: #{res_block_forward.1} parent=0 // pred_fallthru
    _
  // Predicated region
  $region38: #{res_block_forward.1} parent=0 // pred_check
    _
  $region39: #{res_block_forward.1} parent=0 // pred_check_branch
    %39 = sbr.rel (0) target = $region41
  $region40: #{res_block_forward.1} parent=0 // pred_region
    _
  $region41: #{res_block_forward.1} parent=0 // pred_fallthru
    _
  // Predicated region
  $region42: #{res_block_forward.1} parent=0 // pred_check
    _
  $region43: #{res_block_forward.1} parent=0 // pred_check_branch
    %41 = sbr.rel (0) target = $region45
  $region44: #{res_block_forward.1} parent=0 // pred_region
    _
  $region45: #{res_block_forward.1} parent=0 // pred_fallthru
    _
  // Predicated region
  $region46: #{res_block_forward.1} parent=0 // pred_check
    _
  $region47: #{res_block_forward.1} parent=0 // pred_check_branch
    %43 = sbr.rel (0) target = $region49
  $region48: #{res_block_forward.1} parent=0 // pred_region
    _
  $region49: #{res_block_forward.1} parent=0 // pred_fallthru
    _
  // Predicated region
  $region50: #{res_block_forward.1} parent=0 // pred_check
    _
  $region51: #{res_block_forward.1} parent=0 // pred_check_branch
    %45 = sbr.rel (0) target = $region53
  $region52: #{res_block_forward.1} parent=0 // pred_region
    _
  $region53: #{res_block_forward.1} parent=0 // pred_fallthru
    _
  // Predicated region
  $region54: #{res_block_forward.1} parent=0 // pred_check
    _
  $region55: #{res_block_forward.1} parent=0 // pred_check_branch
    %47 = sbr.rel (0) target = $region57
  $region56: #{res_block_forward.1} parent=0 // pred_region
    _
  $region57: #{res_block_forward.1} parent=0 // pred_fallthru
    _
  // Predicated region
  $region58: #{res_block_forward.1} parent=0 // pred_check
    _
  $region59: #{res_block_forward.1} parent=0 // pred_check_branch
    %49 = sbr.rel (0) target = $region61
  $region60: #{res_block_forward.1} parent=0 // pred_region
    _
  $region61: #{res_block_forward.1} parent=0 // pred_fallthru
    _
  %v51 = vld [vmem:[%s0] sm:$0xff]
  %v52 = vld [vmem:[%s1] sm:$0x3]
  %v53 = vld [vmem:[%s2] sm:$0xff]
  %v54 = vld [vmem:[%s2 + $0x8] sm:$0xff]
  %v55 = vld [vmem:[%s2 + $0x10] sm:$0xff]
  %v56 = vld [vmem:[%s2 + $0x18] sm:$0xff]
  %v57 = vld [vmem:[%s2 + $0x20] sm:$0xff]
  %v58 = vld [vmem:[%s2 + $0x28] sm:$0xff]
  %v59 = vld [vmem:[%s2 + $0x30] sm:$0xff]
  %v60 = vld [vmem:[%s2 + $0x38] sm:$0xff]
  %v61 = vld [vmem:[%s2 + $0x40] sm:$0xff]
  %v62 = vld [vmem:[%s2 + $0x48] sm:$0xff]
  %v63 = vld [vmem:[%s2 + $0x50] sm:$0xff]
  %v64 = vld [vmem:[%s2 + $0x58] sm:$0xff]
  %v65 = vld [vmem:[%s2 + $0x60] sm:$0xff]
  %v66 = vld [vmem:[%s2 + $0x68] sm:$0xff]
  %v67 = vld [vmem:[%s2 + $0x70] sm:$0xff]
  %v68 = vld [vmem:[%s2 + $0x78] sm:$0xff]
  %v69 = vld [vmem:[%s3] sm:$0xf]
  %s70 = scalar_lea.vmem %s3, 4
  %v71 = vld [vmem:[%s70] sm:$0xf]
  %v73 = vunpack.c.l.b16 %v51
  %v74 = vunpack.c.h.b16 %v51
  %v75 = vpack.c.b16 %v73, %v73
  %v76 = vpack.c.b16 %v74, %v74
  %77 = vrot.lane.b32.xlu0 %v75, 127
  %v78 = vpop.permute.xlu0 %77
  %79 = vrot.lane.b32.xlu0 %v76, 127
  %v80 = vpop.permute.xlu0 %79
  %vm81 = vcmask 1039360
  %v82 = vsel %vm81, %v78, %v80
  %vm83 = vcmask 64512
  %v85 = vsel %vm83, %v71, 0
  %vm87 = vcmask 1043456
  %v89 = vsel %vm87, %v82, 0
  %v92 = vsel %vm87, %v80, 0
  %94 = vmatpush.bf16.msra.mxu0 0
  %95 = vmatpush.bf16.msra.mxu0 0
  %96 = vmatpush.bf16.msra.mxu0 0
  %97 = vmatpush.bf16.msra.mxu0 0
  %98 = vmatpush.bf16.msra.mxu0 0
  %99 = vmatpush.bf16.msra.mxu0 0
  %100 = vmatpush.bf16.msra.mxu0 0
  %101 = vmatpush.bf16.msra.mxu0 %v89
  %102 = vmatmul.bf16.gmra.mxu0 %v85
  %v103 = vpop.f32.mrf.mxu0
  %v104 = vadd.f32 0.0, %v103
  %v105 = vpop.f32.mrf.mxu0
  %106 = vdwg.mxu0
  %107 = vmatpush.bf16.msra.mxu0 0
  %108 = vmatpush.bf16.msra.mxu0 0
  %109 = vmatpush.bf16.msra.mxu0 0
  %110 = vmatpush.bf16.msra.mxu0 0
  %111 = vmatpush.bf16.msra.mxu0 0
  %112 = vmatpush.bf16.msra.mxu0 0
  %113 = vmatpush.bf16.msra.mxu0 0
  %114 = vmatpush.bf16.msra.mxu0 %v92
  %115 = vmatmul.bf16.gmra.mxu0 %v85
  %v116 = vpop.f32.mrf.mxu0
  %v117 = vadd.f32 0.0, %v116
  %v118 = vpop.f32.mrf.mxu0
  %119 = vdwg.mxu0
  %v121 = vsel %vm83, %v69, 0
  %v124 = vsel %vm87, %v75, 0
  %v127 = vsel %vm87, %v76, 0
  %129 = vmatpush.bf16.msra.mxu0 0
  %130 = vmatpush.bf16.msra.mxu0 0
  %131 = vmatpush.bf16.msra.mxu0 0
  %132 = vmatpush.bf16.msra.mxu0 0
  %133 = vmatpush.bf16.msra.mxu0 0
  %134 = vmatpush.bf16.msra.mxu0 0
  %135 = vmatpush.bf16.msra.mxu0 0
  %136 = vmatpush.bf16.msra.mxu0 %v124
  %137 = vmatmul.bf16.gmra.mxu0 %v121
  %v138 = vpop.f32.mrf.mxu0
  %v139 = vadd.f32 %v104, %v138
  %v140 = vpop.f32.mrf.mxu0
  %141 = vdwg.mxu0
  %142 = vmatpush.bf16.msra.mxu0 0
  %143 = vmatpush.bf16.msra.mxu0 0
  %144 = vmatpush.bf16.msra.mxu0 0
  %145 = vmatpush.bf16.msra.mxu0 0
  %146 = vmatpush.bf16.msra.mxu0 0
  %147 = vmatpush.bf16.msra.mxu0 0
  %148 = vmatpush.bf16.msra.mxu0 0
  %149 = vmatpush.bf16.msra.mxu0 %v127
  %150 = vmatmul.bf16.gmra.mxu0 %v121
  %v151 = vpop.f32.mrf.mxu0
  %v152 = vadd.f32 %v117, %v151
  %v153 = vpop.f32.mrf.mxu0
  %154 = vdwg.mxu0
  %s155 = scalar_lea.vmem %s3, 8
  %v156 = vld [vmem:[%s155] sm:$0xf]
  %157 = vrot.lane.b32.xlu0 %v75, 126
  %v158 = vpop.permute.xlu0 %157
  %159 = vrot.lane.b32.xlu0 %v76, 126
  %v160 = vpop.permute.xlu0 %159
  %vm161 = vcmask 1031168
  %v162 = vsel %vm161, %v158, %v160
  %v164 = vsel %vm83, %v156, 0
  %v167 = vsel %vm87, %v162, 0
  %v170 = vsel %vm87, %v160, 0
  %172 = vmatpush.bf16.msra.mxu0 0
  %173 = vmatpush.bf16.msra.mxu0 0
  %174 = vmatpush.bf16.msra.mxu0 0
  %175 = vmatpush.bf16.msra.mxu0 0
  %176 = vmatpush.bf16.msra.mxu0 0
  %177 = vmatpush.bf16.msra.mxu0 0
  %178 = vmatpush.bf16.msra.mxu0 0
  %179 = vmatpush.bf16.msra.mxu0 %v167
  %180 = vmatmul.bf16.gmra.mxu0 %v164
  %v181 = vpop.f32.mrf.mxu0
  %v182 = vadd.f32 0.0, %v181
  %v183 = vpop.f32.mrf.mxu0
  %184 = vdwg.mxu0
  %185 = vmatpush.bf16.msra.mxu0 0
  %186 = vmatpush.bf16.msra.mxu0 0
  %187 = vmatpush.bf16.msra.mxu0 0
  %188 = vmatpush.bf16.msra.mxu0 0
  %189 = vmatpush.bf16.msra.mxu0 0
  %190 = vmatpush.bf16.msra.mxu0 0
  %191 = vmatpush.bf16.msra.mxu0 0
  %192 = vmatpush.bf16.msra.mxu0 %v170
  %193 = vmatmul.bf16.gmra.mxu0 %v164
  %v194 = vpop.f32.mrf.mxu0
  %v195 = vadd.f32 0.0, %v194
  %v196 = vpop.f32.mrf.mxu0
  %197 = vdwg.mxu0
  %v198 = vadd.f32 %v139, %v182
  %v199 = vadd.f32 %v152, %v195
  %v200 = vld [vmem:[%s4] sm:$0xff]
  %202 = vset.pattern.permute.xlu0 0
  %203 = vperm.xlu0 %202, %v200
  %v204 = vpop.permute.xlu0 %203
  %v206 = vadd.f32 %v198, %v204
  %v207 = vadd.f32 %v199, %v204
  %v208 = vld [vmem:[%s11] sm:$0xf]
  %v209 = vld [vmem:[%s12] sm:$0xff]
  %211 = vset.pattern.permute.xlu0 0
  %212 = vperm.xlu0 %211, %v209
  %v213 = vpop.permute.xlu0 %212
  %v216 = vsel %vm83, %v208, 0
  %218 = vmatpush.bf16.msra.mxu0 0
  %219 = vmatpush.bf16.msra.mxu0 0
  %220 = vmatpush.bf16.msra.mxu0 0
  %221 = vmatpush.bf16.msra.mxu0 0
  %222 = vmatpush.bf16.msra.mxu0 0
  %223 = vmatpush.bf16.msra.mxu0 0
  %224 = vmatpush.bf16.msra.mxu0 0
  %225 = vmatpush.bf16.msra.mxu0 %v167
  %226 = vmatmul.bf16.gmra.mxu0 %v216
  %v227 = vpop.f32.mrf.mxu0
  %v228 = vadd.f32 %v213, %v227
  %v229 = vpop.f32.mrf.mxu0
  %230 = vdwg.mxu0
  %v231 = vld [vmem:[%s5] sm:$0xff]
  %v232 = vld [vmem:[%s6] sm:$0xff]
  %235 = vrot.lane.b32.xlu0 %v206, 127
  %v236 = vpop.permute.xlu0 %235
  %237 = vrot.lane.b32.xlu0 %v207, 127
  %v238 = vpop.permute.xlu0 %237
  %vm239 = vcmask 1039360
  %v240 = vsel %vm239, %v236, %v238
  %242 = vmatpush.msra.mxu0 %v68
  %243 = vmatpush.msra.mxu0 %v67
  %244 = vmatpush.msra.mxu0 %v66
  %245 = vmatpush.msra.mxu0 %v65
  %246 = vmatpush.msra.mxu0 %v64
  %247 = vmatpush.msra.mxu0 %v63
  %248 = vmatpush.msra.mxu0 %v62
  %249 = vmatpush.msra.mxu0 %v61
  %250 = vmatpush.msra.mxu0 %v60
  %251 = vmatpush.msra.mxu0 %v59
  %252 = vmatpush.msra.mxu0 %v58
  %253 = vmatpush.msra.mxu0 %v57
  %254 = vmatpush.msra.mxu0 %v56
  %255 = vmatpush.msra.mxu0 %v55
  %256 = vmatpush.msra.mxu0 %v54
  %257 = vmatpush.msra.mxu0 %v53
  %258 = vmatmul.f32.gmra.mxu0 %v240
  %v259 = vpop.f32.mrf.mxu0
  %v260 = vadd.f32 0.0, %v259
  %261 = vdwg.mxu0
  %v262 = vmul.f32 %v260, 0.03125
  %264 = vset.pattern.permute.xlu0 0
  %265 = vperm.xlu0 %264, %v262
  %v266 = vpop.permute.xlu0 %265
  %v268 = vsub.f32 %v206, %v266
  %v269 = vsub.f32 %v207, %v266
  %v270 = vmul.f32 %v268, %v268
  %v271 = vmul.f32 %v269, %v269
  %274 = vrot.lane.b32.xlu0 %v270, 127
  %v275 = vpop.permute.xlu0 %274
  %276 = vrot.lane.b32.xlu0 %v271, 127
  %v277 = vpop.permute.xlu0 %276
  %v278 = vsel %vm239, %v275, %v277
  %280 = vmatpush.msra.mxu0 %v68
  %281 = vmatpush.msra.mxu0 %v67
  %282 = vmatpush.msra.mxu0 %v66
  %283 = vmatpush.msra.mxu0 %v65
  %284 = vmatpush.msra.mxu0 %v64
  %285 = vmatpush.msra.mxu0 %v63
  %286 = vmatpush.msra.mxu0 %v62
  %287 = vmatpush.msra.mxu0 %v61
  %288 = vmatpush.msra.mxu0 %v60
  %289 = vmatpush.msra.mxu0 %v59
  %290 = vmatpush.msra.mxu0 %v58
  %291 = vmatpush.msra.mxu0 %v57
  %292 = vmatpush.msra.mxu0 %v56
  %293 = vmatpush.msra.mxu0 %v55
  %294 = vmatpush.msra.mxu0 %v54
  %295 = vmatpush.msra.mxu0 %v53
  %296 = vmatmul.f32.gmra.mxu0 %v278
  %v297 = vpop.f32.mrf.mxu0
  %v298 = vadd.f32 0.0, %v297
  %299 = vdwg.mxu0
  %v300 = vmul.f32 %v298, 0.03125
  %v301 = vmax.f32 %v300, 0.0
  %v302 = vadd.f32 %v301, 1e-05
  %v303 = vrsqrt.pop %v302
  %v304 = vmul.f32 %v303, %v302
  %v305 = vmul.f32 %v304, %v303
  %v306 = vmul.f32 0.5, %v305
  %v307 = vsub.f32 1.5, %v306
  %v308 = vmul.f32 %v303, %v307
  %vm309 = vweird.f32 %v302
  %vm310 = vweird.f32 %v303
  %vm311 = vmor %vm309, %vm310
  %v312 = vsel %vm311, %v303, %v308
  %v313 = vmul.f32 %v231, %v312
  %v314 = vmul.f32 %v262, %v313
  %v315 = vsub.f32 %v232, %v314
  %317 = vset.pattern.permute.xlu0 0
  %318 = vperm.xlu0 %317, %v313
  %v319 = vpop.permute.xlu0 %318
  %v321 = vmul.f32 %v206, %v319
  %v322 = vmul.f32 %v207, %v319
  %324 = vset.pattern.permute.xlu0 0
  %325 = vperm.xlu0 %324, %v315
  %v326 = vpop.permute.xlu0 %325
  %v328 = vadd.f32 %v321, %v326
  %v329 = vadd.f32 %v322, %v326
  %v330 = vmax.f32 %v328, 0.0
  %v331 = vmax.f32 %v329, 0.0
  %v333 = vperm.slane %v52, 0
  %v334 = vperm.slane %v52, 1
  %v337 = vmul.f32 %v330, %v333
  %v338 = vmul.f32 %v331, %v334
  %v339 = vpack.c.bf16 %v338, %v337
  %v340 = vld [vmem:[%s7] sm:$0xf]
  %s341 = scalar_lea.vmem %s7, 4
  %v342 = vld [vmem:[%s341] sm:$0xf]
  %v344 = vunpack.c.l.b16 %v339
  %v345 = vunpack.c.h.b16 %v339
  %v346 = vpack.c.b16 %v344, %v344
  %v347 = vpack.c.b16 %v345, %v345
  %348 = vrot.lane.b32.xlu0 %v346, 127
  %v349 = vpop.permute.xlu0 %348
  %350 = vrot.lane.b32.xlu0 %v347, 127
  %v351 = vpop.permute.xlu0 %350
  %v352 = vsel %vm81, %v349, %v351
  %v354 = vsel %vm83, %v342, 0
  %v357 = vsel %vm87, %v352, 0
  %359 = vmatpush.bf16.msra.mxu0 0
  %360 = vmatpush.bf16.msra.mxu0 0
  %361 = vmatpush.bf16.msra.mxu0 0
  %362 = vmatpush.bf16.msra.mxu0 0
  %363 = vmatpush.bf16.msra.mxu0 0
  %364 = vmatpush.bf16.msra.mxu0 0
  %365 = vmatpush.bf16.msra.mxu0 0
  %366 = vmatpush.bf16.msra.mxu0 %v357
  %367 = vmatmul.bf16.gmra.mxu0 %v354
  %v368 = vpop.f32.mrf.mxu0
  %v369 = vadd.f32 0.0, %v368
  %v370 = vpop.f32.mrf.mxu0
  %371 = vdwg.mxu0
  %v373 = vsel %vm83, %v340, 0
  %v376 = vsel %vm87, %v339, 0
  %378 = vmatpush.bf16.msra.mxu0 0
  %379 = vmatpush.bf16.msra.mxu0 0
  %380 = vmatpush.bf16.msra.mxu0 0
  %381 = vmatpush.bf16.msra.mxu0 0
  %382 = vmatpush.bf16.msra.mxu0 0
  %383 = vmatpush.bf16.msra.mxu0 0
  %384 = vmatpush.bf16.msra.mxu0 0
  %385 = vmatpush.bf16.msra.mxu0 %v376
  %386 = vmatmul.bf16.gmra.mxu0 %v373
  %v387 = vpop.f32.mrf.mxu0
  %v388 = vadd.f32 %v369, %v387
  %v389 = vpop.f32.mrf.mxu0
  %390 = vdwg.mxu0
  %s391 = scalar_lea.vmem %s7, 8
  %v392 = vld [vmem:[%s391] sm:$0xf]
  %393 = vrot.lane.b32.xlu0 %v346, 126
  %v394 = vpop.permute.xlu0 %393
  %395 = vrot.lane.b32.xlu0 %v347, 126
  %v396 = vpop.permute.xlu0 %395
  %v397 = vsel %vm161, %v394, %v396
  %v399 = vsel %vm83, %v392, 0
  %v402 = vsel %vm87, %v397, 0
  %404 = vmatpush.bf16.msra.mxu0 0
  %405 = vmatpush.bf16.msra.mxu0 0
  %406 = vmatpush.bf16.msra.mxu0 0
  %407 = vmatpush.bf16.msra.mxu0 0
  %408 = vmatpush.bf16.msra.mxu0 0
  %409 = vmatpush.bf16.msra.mxu0 0
  %410 = vmatpush.bf16.msra.mxu0 0
  %411 = vmatpush.bf16.msra.mxu0 %v402
  %412 = vmatmul.bf16.gmra.mxu0 %v399
  %v413 = vpop.f32.mrf.mxu0
  %v414 = vadd.f32 0.0, %v413
  %v415 = vpop.f32.mrf.mxu0
  %416 = vdwg.mxu0
  %v417 = vadd.f32 %v388, %v414
  %v418 = vld [vmem:[%s8] sm:$0xff]
  %420 = vset.pattern.permute.xlu0 0
  %421 = vperm.xlu0 %420, %v418
  %v422 = vpop.permute.xlu0 %421
  %v424 = vadd.f32 %v417, %v422
  %v425 = vld [vmem:[%s9] sm:$0xff]
  %v426 = vld [vmem:[%s10] sm:$0xff]
  %427 = vmatpush.msra.mxu0 %v68
  %428 = vmatpush.msra.mxu0 %v67
  %429 = vmatpush.msra.mxu0 %v66
  %430 = vmatpush.msra.mxu0 %v65
  %431 = vmatpush.msra.mxu0 %v64
  %432 = vmatpush.msra.mxu0 %v63
  %433 = vmatpush.msra.mxu0 %v62
  %434 = vmatpush.msra.mxu0 %v61
  %435 = vmatpush.msra.mxu0 %v60
  %436 = vmatpush.msra.mxu0 %v59
  %437 = vmatpush.msra.mxu0 %v58
  %438 = vmatpush.msra.mxu0 %v57
  %439 = vmatpush.msra.mxu0 %v56
  %440 = vmatpush.msra.mxu0 %v55
  %441 = vmatpush.msra.mxu0 %v54
  %442 = vmatpush.msra.mxu0 %v53
  %443 = vmatmul.f32.gmra.mxu0 %v424
  %v444 = vpop.f32.mrf.mxu0
  %v445 = vadd.f32 0.0, %v444
  %446 = vdwg.mxu0
  %v447 = vmul.f32 %v445, 0.03125
  %449 = vset.pattern.permute.xlu0 0
  %450 = vperm.xlu0 %449, %v447
  %v451 = vpop.permute.xlu0 %450
  %v453 = vsub.f32 %v424, %v451
  %v454 = vmul.f32 %v453, %v453
  %455 = vmatpush.msra.mxu0 %v68
  %456 = vmatpush.msra.mxu0 %v67
  %457 = vmatpush.msra.mxu0 %v66
  %458 = vmatpush.msra.mxu0 %v65
  %459 = vmatpush.msra.mxu0 %v64
  %460 = vmatpush.msra.mxu0 %v63
  %461 = vmatpush.msra.mxu0 %v62
  %462 = vmatpush.msra.mxu0 %v61
  %463 = vmatpush.msra.mxu0 %v60
  %464 = vmatpush.msra.mxu0 %v59
  %465 = vmatpush.msra.mxu0 %v58
  %466 = vmatpush.msra.mxu0 %v57
  %467 = vmatpush.msra.mxu0 %v56
  %468 = vmatpush.msra.mxu0 %v55
  %469 = vmatpush.msra.mxu0 %v54
  %470 = vmatpush.msra.mxu0 %v53
  %471 = vmatmul.f32.gmra.mxu0 %v454
  %v472 = vpop.f32.mrf.mxu0
  %v473 = vadd.f32 0.0, %v472
  %474 = vdwg.mxu0
  %v475 = vmul.f32 %v473, 0.03125
  %v476 = vmax.f32 %v475, 0.0
  %v477 = vadd.f32 %v476, 1e-05
  %v478 = vrsqrt.pop %v477
  %v479 = vmul.f32 %v478, %v477
  %v480 = vmul.f32 %v479, %v478
  %v481 = vmul.f32 0.5, %v480
  %v482 = vsub.f32 1.5, %v481
  %v483 = vmul.f32 %v478, %v482
  %vm484 = vweird.f32 %v477
  %vm485 = vweird.f32 %v478
  %vm486 = vmor %vm484, %vm485
  %v487 = vsel %vm486, %v478, %v483
  %v488 = vmul.f32 %v425, %v487
  %v489 = vmul.f32 %v447, %v488
  %v490 = vsub.f32 %v426, %v489
  %v491 = vld [vmem:[%s13] sm:$0xff]
  %v492 = vld [vmem:[%s14] sm:$0xff]
  %493 = vmatpush.msra.mxu0 %v68
  %494 = vmatpush.msra.mxu0 %v67
  %495 = vmatpush.msra.mxu0 %v66
  %496 = vmatpush.msra.mxu0 %v65
  %497 = vmatpush.msra.mxu0 %v64
  %498 = vmatpush.msra.mxu0 %v63
  %499 = vmatpush.msra.mxu0 %v62
  %500 = vmatpush.msra.mxu0 %v61
  %501 = vmatpush.msra.mxu0 %v60
  %502 = vmatpush.msra.mxu0 %v59
  %503 = vmatpush.msra.mxu0 %v58
  %504 = vmatpush.msra.mxu0 %v57
  %505 = vmatpush.msra.mxu0 %v56
  %506 = vmatpush.msra.mxu0 %v55
  %507 = vmatpush.msra.mxu0 %v54
  %508 = vmatpush.msra.mxu0 %v53
  %509 = vmatmul.f32.gmra.mxu0 %v228
  %v510 = vpop.f32.mrf.mxu0
  %v511 = vadd.f32 0.0, %v510
  %512 = vdwg.mxu0
  %v513 = vmul.f32 %v511, 0.03125
  %515 = vset.pattern.permute.xlu0 0
  %516 = vperm.xlu0 %515, %v513
  %v517 = vpop.permute.xlu0 %516
  %v519 = vsub.f32 %v228, %v517
  %v520 = vmul.f32 %v519, %v519
  %521 = vmatpush.msra.mxu0 %v68
  %522 = vmatpush.msra.mxu0 %v67
  %523 = vmatpush.msra.mxu0 %v66
  %524 = vmatpush.msra.mxu0 %v65
  %525 = vmatpush.msra.mxu0 %v64
  %526 = vmatpush.msra.mxu0 %v63
  %527 = vmatpush.msra.mxu0 %v62
  %528 = vmatpush.msra.mxu0 %v61
  %529 = vmatpush.msra.mxu0 %v60
  %530 = vmatpush.msra.mxu0 %v59
  %531 = vmatpush.msra.mxu0 %v58
  %532 = vmatpush.msra.mxu0 %v57
  %533 = vmatpush.msra.mxu0 %v56
  %534 = vmatpush.msra.mxu0 %v55
  %535 = vmatpush.msra.mxu0 %v54
  %536 = vmatpush.msra.mxu0 %v53
  %537 = vmatmul.f32.gmra.mxu0 %v520
  %v538 = vpop.f32.mrf.mxu0
  %v539 = vadd.f32 0.0, %v538
  %540 = vdwg.mxu0
  %v541 = vmul.f32 %v539, 0.03125
  %v542 = vmax.f32 %v541, 0.0
  %v543 = vadd.f32 %v542, 1e-05
  %v544 = vrsqrt.pop %v543
  %v545 = vmul.f32 %v544, %v543
  %v546 = vmul.f32 %v545, %v544
  %v547 = vmul.f32 0.5, %v546
  %v548 = vsub.f32 1.5, %v547
  %v549 = vmul.f32 %v544, %v548
  %vm550 = vweird.f32 %v543
  %vm551 = vweird.f32 %v544
  %vm552 = vmor %vm550, %vm551
  %v553 = vsel %vm552, %v544, %v549
  %v554 = vmul.f32 %v491, %v553
  %v555 = vmul.f32 %v513, %v554
  %v556 = vsub.f32 %v492, %v555
  %558 = vset.pattern.permute.xlu0 0
  %559 = vperm.xlu0 %558, %v488
  %v560 = vpop.permute.xlu0 %559
  %v562 = vmul.f32 %v424, %v560
  %564 = vset.pattern.permute.xlu0 0
  %565 = vperm.xlu0 %564, %v490
  %v566 = vpop.permute.xlu0 %565
  %v568 = vadd.f32 %v562, %v566
  %570 = vset.pattern.permute.xlu0 0
  %571 = vperm.xlu0 %570, %v554
  %v572 = vpop.permute.xlu0 %571
  %v574 = vmul.f32 %v228, %v572
  %576 = vset.pattern.permute.xlu0 0
  %577 = vperm.xlu0 %576, %v556
  %v578 = vpop.permute.xlu0 %577
  %v580 = vadd.f32 %v574, %v578
  %v581 = vadd.f32 %v568, %v580
  %v582 = vmax.f32 %v581, 0.0
  %583 = vst [vmem:[%s15] sm:$0xff] %v582
  // Predicated region
  $region62: #{res_block_forward.1} parent=0 // pred_check
    _
  $region63: #{res_block_forward.1} parent=0 // pred_check_branch
    %585 = sbr.rel (0) target = $region65
  $region64: #{res_block_forward.1} parent=0 // pred_region
    _
  $region65: #{res_block_forward.1} parent=0 // pred_fallthru
    _
  // Predicated region
  $region66: #{res_block_forward.1} parent=0 // pred_check
    _
  $region67: #{res_block_forward.1} parent=0 // pred_check_branch
    %587 = sbr.rel (0) target = $region69
  $region68: #{res_block_forward.1} parent=0 // pred_region
    _
  $region69: #{res_block_forward.1} parent=0 // pred_fallthru
    _

</llo_original>
